<compile_context>
chip_gen: v5e
topology: v5e:2x2
jax: 0.10.0
libtpu: 0.0.40
codegen_flags: <defaults>
</compile_context>

<pallas_src>
from functools import partial

import numpy as np

import jax
import jax.numpy as jnp
from jax.experimental import pallas as pl
from jax.experimental.pallas import tpu as pltpu


# ---------------------------------------------------------------------------
# host-side helpers
# ---------------------------------------------------------------------------
def _round_up(x, m):
    return (x + m - 1) // m * m


def _cdiv(a, b):
    return -(-a // b)


def _next_pow2(x):
    return 1 << max(0, (x - 1).bit_length())


def _vmem_budget():
    """Per-generation VMEM budgeting (v7x has only 64 MiB physical per core)."""
    cap = 64 * 1024 * 1024                       # conservative default (= v7x)
    try:
        info = pltpu.get_tpu_info()
        cap = int(getattr(info, "vmem_capacity_bytes", cap)) or cap
    except Exception:
        pass
    budget = min(int(cap * 0.55), 72 * 1024 * 1024)   # per-step working-set target
    limit = min(int(cap * 0.75), 100 * 1024 * 1024)   # scoped VMEM limit for Mosaic
    return budget, limit


def _pick_row_block(n_rows, bytes_per_row, budget_bytes, max_bm):
    """Row block: multiple of 8, fits the VMEM budget, >= 2 grid steps when the
    row count allows it (megacore / pipelining), never one giant block."""
    rows8 = _round_up(max(n_rows, 1), 8)
    cap = max(8, min(max_bm, (budget_bytes // max(bytes_per_row, 1)) // 8 * 8))
    grid = _cdiv(rows8, cap)
    if rows8 >= 16:
        grid = max(grid, 2)
    return min(cap, _round_up(_cdiv(rows8, grid), 8))


# ---------------------------------------------------------------------------
# in-kernel helpers (shared by both layouts)
# ---------------------------------------------------------------------------
def _causal_shift(x, d, seg_len, tpos):
    """out[:, l] = x[:, l - d] if (l % seg_len) >= d else 0.

    Per-segment causal (zero-filled) shift along the lane axis.  When
    seg_len == lane width this is a plain causal time shift.
    NOTE(review): a pltpu.roll + iota-mask variant was evaluated; the validated
    zeros||slice concat is kept (Mosaic lowers it to comparable lane
    rotate/select sequences).
    """
    rows, width = x.shape
    if d >= seg_len:
        return jnp.zeros_like(x)
    y = jnp.concatenate([jnp.zeros((rows, d), x.dtype), x[:, :width - d]], axis=1)
    if seg_len == width:
        return y
    return jnp.where(tpos >= d, y, jnp.zeros_like(y))


def _decay_scan(x, beta, t_valid, seg_len, tpos):
    """y[t] = sum_{k=0..t} beta^k x[t-k] per segment (log2(T)-depth scan)."""
    y = x
    b = beta
    d = 1
    while d < t_valid:
        y = y + b * _causal_shift(y, d, seg_len, tpos)
        b = b * b
        d *= 2
    return y


def _prefix_scan(x, t_valid, seg_len, tpos):
    """y[t] = sum_{k=0..t} x[t-k] per segment."""
    y = x
    d = 1
    while d < t_valid:
        y = y + _causal_shift(y, d, seg_len, tpos)
        d *= 2
    return y


def _pow_int(x, n):
    """x**n for a static positive integer n (repeated squaring)."""
    r = None
    b = x
    while n:
        if n & 1:
            r = b if r is None else r * b
        b = b * b
        n >>= 1
    return r


def _z_from_spikes_scan(spk, K, t_valid, seg_len, tpos):
    """z[t] = sum_{k<K} (k+1) spk[t-k] via two prefix scans.

    z[t] - z[t-1] = (P[t] - P[t-K]) - K*spk[t-K] with P the prefix sum of spk.
    Every intermediate is an integer representable in f32 -> exact z.
    """
    p = _prefix_scan(spk, t_valid, seg_len, tpos)
    if K < t_valid:
        w = p - _causal_shift(p, K, seg_len, tpos)
        dz = w - float(K) * _causal_shift(spk, K, seg_len, tpos)
    else:
        dz = p
    return _prefix_scan(dz, t_valid, seg_len, tpos)


def _phi_tile(row0, col0, tile, K, dtype):
    """Phi[row0+r, col0+c] = (col - row + 1) inside the causal band, else 0."""
    r = jax.lax.broadcasted_iota(jnp.int32, (tile, tile), 0) + row0
    c = jax.lax.broadcasted_iota(jnp.int32, (tile, tile), 1) + col0
    diff = c - r
    vals = jnp.where((diff >= 0) & (diff < K), (diff + 1).astype(jnp.float32), 0.0)
    return vals.astype(dtype)


# ---------------------------------------------------------------------------
# kernels
# ---------------------------------------------------------------------------
def _block_kernel_packed(cur_ref, beta_ref, vth_ref, *out_refs,
                         K, t_valid, seg_len, with_spikes):
    """Small t_len: several channels' time series packed per 128-lane row."""
    width = cur_ref.shape[-1]
    cur = cur_ref[...]
    beta = beta_ref[...]
    vth = vth_ref[...]
    tpos = None
    if seg_len != width:
        tpos = jax.lax.broadcasted_iota(jnp.int32, (1, width), 1) % seg_len

    mem = _decay_scan(cur, beta, t_valid, seg_len, tpos)
    if K < t_valid:
        mem = mem - _pow_int(beta, K) * _causal_shift(mem, K, seg_len, tpos)

    if with_spikes:
        gz_ref, z_ref, spk_ref, mem_ref = out_refs
    else:
        gz_ref, z_ref, mem_ref = out_refs

    mem_ref[...] = mem                                 # store early (writeback overlap)
    spk = ((mem - vth) > 0.0).astype(jnp.float32)
    if with_spikes:
        spk_ref[...] = spk

    z = _z_from_spikes_scan(spk, K, t_valid, seg_len, tpos)
    z_ref[...] = z
    gz_ref[...] = jnp.where(z == 1.0, z, 0.0)


def _block_kernel_wide(cur_ref, params_ref, *out_refs,
                       K, t_valid, tile, with_spikes, use_matmul):
    """Large t_len: time on lanes; z via banded bf16 MXU matmul (Phi on the fly)."""
    tp = cur_ref.shape[-1]
    cur = cur_ref[...]
    beta = params_ref[:, 0:1]
    vth = params_ref[:, 1:2]

    mem = _decay_scan(cur, beta, t_valid, tp, None)
    if K < t_valid:
        mem = mem - params_ref[:, 2:3] * _causal_shift(mem, K, tp, None)

    if with_spikes:
        gz_ref, z_ref, spk_ref, mem_ref = out_refs
    else:
        gz_ref, z_ref, mem_ref = out_refs

    mem_ref[...] = mem                                 # store early (writeback overlap)
    spk = ((mem - vth) > 0.0).astype(jnp.float32)
    if with_spikes:
        spk_ref[...] = spk

    if use_matmul:
        # z = spk @ Phi with Phi generated per (tile x tile) block in bf16.
        # Exact: spk in {0,1}, Phi entries are integers <= K <= 256, f32 accum.
        # Only the band tiles (k_lo..j) per output-time tile contribute.
        spk_mm = spk.astype(jnp.bfloat16)
        nj = tp // tile
        for j in range(nj):
            k_lo = max(0, (j * tile - (K - 1)) // tile)
            acc = None
            for k in range(k_lo, j + 1):
                phi = _phi_tile(k * tile, j * tile, tile, K, jnp.bfloat16)
                part = jnp.dot(spk_mm[:, k * tile:(k + 1) * tile], phi,
                               preferred_element_type=jnp.float32)
                acc = part if acc is None else acc + part
            zj = acc
            z_ref[:, j * tile:(j + 1) * tile] = zj
            gz_ref[:, j * tile:(j + 1) * tile] = jnp.where(zj == 1.0, zj, 0.0)
    else:
        # K > 256: bf16 cannot hold all Phi entries exactly -> use the exact
        # integer double-prefix-scan instead of f32 MXU emulation.
        z = _z_from_spikes_scan(spk, K, t_valid, tp, None)
        z_ref[...] = z
        gz_ref[...] = jnp.where(z == 1.0, z, 0.0)


# ---------------------------------------------------------------------------
# wrappers
# ---------------------------------------------------------------------------
def _forward_small(current, beta_n, vth_n, K, with_spikes, budget, vmem_limit):
    """t_len < 128: segment-packed layout (g channels per 128-lane row)."""
    B, N, T = current.shape
    R = B * N
    seg = min(128, _next_pow2(T))
    g = 128 // seg
    width = 128

    cur2 = current.reshape(R, T)
    beta_r = jnp.tile(beta_n[None, :], (B, 1)).reshape(R)
    vth_r = jnp.tile(vth_n[None, :], (B, 1)).reshape(R)
    if seg != T:
        cur2 = jnp.pad(cur2, ((0, 0), (0, seg - T)))
    rg = _round_up(R, g)
    if rg != R:
        cur2 = jnp.pad(cur2, ((0, rg - R), (0, 0)))
        beta_r = jnp.pad(beta_r, (0, rg - R))
        vth_r = jnp.pad(vth_r, (0, rg - R))
    rows = rg // g
    cur_slab = cur2.reshape(rows, width)
    # Per-channel params replicated to full lane width (each value repeated seg
    # times).  Simple + correct; costs ~2 extra slab reads (could be delivered
    # per-segment and expanded in-kernel to shave that, at higher lowering risk).
    beta_slab = jnp.repeat(beta_r, seg).reshape(rows, width)
    vth_slab = jnp.repeat(vth_r, seg).reshape(rows, width)

    n_out = 4 if with_spikes else 3
    bytes_per_row = width * 4 * (6 + 2 * n_out + 4)
    bm = _pick_row_block(rows, bytes_per_row, budget, max_bm=1024)
    rows_pad = _round_up(rows, bm)
    if rows_pad != rows:
        pad = ((0, rows_pad - rows), (0, 0))
        cur_slab = jnp.pad(cur_slab, pad)
        beta_slab = jnp.pad(beta_slab, pad)
        vth_slab = jnp.pad(vth_slab, pad)

    kernel = partial(_block_kernel_packed, K=K, t_valid=T, seg_len=seg,
                     with_spikes=with_spikes)
    rmap = lambda i: (i, 0)
    outs = pl.pallas_call(
        kernel,
        grid=(rows_pad // bm,),
        in_specs=[pl.BlockSpec((bm, width), rmap)] * 3,
        out_specs=tuple(pl.BlockSpec((bm, width), rmap) for _ in range(n_out)),
        out_shape=tuple(jax.ShapeDtypeStruct((rows_pad, width), jnp.float32)
                        for _ in range(n_out)),
        compiler_params=pltpu.CompilerParams(
            dimension_semantics=("parallel",),
            vmem_limit_bytes=vmem_limit),
    )(cur_slab, beta_slab, vth_slab)

    def unpack(a):
        return a.reshape(rows_pad * g, seg)[:R, :T].reshape(B, N, T)

    return tuple(unpack(o) for o in outs)


def _forward_large(current, beta_n, vth_n, K, with_spikes, budget, vmem_limit):
    """t_len >= 128: rows on sublanes, time (padded to 128 multiple) on lanes."""
    B, N, T = current.shape
    R = B * N
    tp = _round_up(T, 128)
    tile = 512 if tp % 512 == 0 else (256 if tp % 256 == 0 else 128)
    tile = min(tile, tp)

    cur2 = current.reshape(R, T)
    if tp != T:
        cur2 = jnp.pad(cur2, ((0, 0), (0, tp - T)))
    beta_r = jnp.tile(beta_n[None, :], (B, 1)).reshape(R)
    vth_r = jnp.tile(vth_n[None, :], (B, 1)).reshape(R)
    # one packed (R, 8) params block: beta, v_th, host-precomputed beta**K, pad
    params = jnp.concatenate(
        [beta_r[:, None], vth_r[:, None], (beta_r ** K)[:, None],
         jnp.zeros((R, 5), jnp.float32)], axis=1)

    n_out = 4 if with_spikes else 3
    bytes_per_row = tp * 4 * (2 + 2 * n_out + 4) + tp * 2
    bm = _pick_row_block(R, bytes_per_row, budget, max_bm=1024)
    r_pad = _round_up(R, bm)
    if r_pad != R:
        cur2 = jnp.pad(cur2, ((0, r_pad - R), (0, 0)))
        params = jnp.pad(params, ((0, r_pad - R), (0, 0)))

    use_matmul = min(K, tp) <= 256      # bf16 holds every Phi entry exactly
    kernel = partial(_block_kernel_wide, K=K, t_valid=T, tile=tile,
                     with_spikes=with_spikes, use_matmul=use_matmul)
    rmap = lambda i: (i, 0)
    outs = pl.pallas_call(
        kernel,
        grid=(r_pad // bm,),
        in_specs=[pl.BlockSpec((bm, tp), rmap), pl.BlockSpec((bm, 8), rmap)],
        out_specs=tuple(pl.BlockSpec((bm, tp), rmap) for _ in range(n_out)),
        out_shape=tuple(jax.ShapeDtypeStruct((r_pad, tp), jnp.float32)
                        for _ in range(n_out)),
        compiler_params=pltpu.CompilerParams(
            dimension_semantics=("parallel",),
            vmem_limit_bytes=vmem_limit),
    )(cur2, params)

    def unpack(a):
        return a[:R, :T].reshape(B, N, T)

    return tuple(unpack(o) for o in outs)


def block_forward(current, beta, v_th, *, t_len, v_init=None, mode="train"):
    """Pallas equivalent of Block.forward.

    current : (B, N, T) float32, beta : (N,), v_th : scalar or (N,),
    v_init  : optional (B, N), mode in {"train", "val"}.
    """
    if mode not in ("train", "val"):
        raise ValueError(f"unknown mode: {mode}")
    current = jnp.asarray(current, jnp.float32)
    B, N, T = current.shape
    K = int(t_len)
    beta = jnp.asarray(beta, jnp.float32).reshape(N)
    vth = jnp.asarray(v_th, jnp.float32)
    if vth.ndim == 0:
        vth = jnp.full((N,), vth, jnp.float32)
    vth = vth.reshape(N)
    if v_init is not None:
        current = current.at[:, :, 0].add(
            beta[None, :] * jnp.asarray(v_init, jnp.float32))

    with_spikes = (mode == "val")
    budget, vmem_limit = _vmem_budget()
    fwd = _forward_small if T < 128 else _forward_large
    outs = fwd(current, beta, vth, K, with_spikes, budget, vmem_limit)

    if with_spikes:
        gz, z_copy, spk, mem = outs
        return gz, z_copy, spk[:, None], mem   # torch returns spikes as (B,1,N,T)
    gz, z_copy, mem = outs
    return gz, z_copy, mem


# ---------------------------------------------------------------------------
# pure-numpy reference of the PyTorch forward
# ---------------------------------------------------------------------------
def _ref_forward(current, beta, v_th, v_init, t_len, mode="train"):
    cur = np.array(current, np.float32)
    beta = np.asarray(beta, np.float32)
    vth = np.asarray(v_th, np.float32)
    if v_init is not None:
        cur[:, :, 0] += beta[None, :] * np.asarray(v_init, np.float32)
    B, N, T = cur.shape
    K = t_len
    pad = np.concatenate([np.zeros((B, N, K - 1), np.float32), cur], axis=-1)
    mem = np.zeros((B, N, T), np.float32)
    for j in range(K):
        mem += (beta ** (K - 1 - j))[None, :, None] * pad[:, :, j:j + T]
    spk = (mem - vth[None, :, None] > 0).astype(np.float32)
    pspk = np.concatenate([np.zeros((B, N, K - 1), np.float32), spk], axis=-1)
    z = np.zeros((B, N, T), np.float32)
    for j in range(K):
        z += float(K - j) * pspk[:, :, j:j + T]
    gz = np.where(z == 1.0, 1.0, 0.0).astype(np.float32)
    if mode == "val":
        return gz, z, spk[:, None], mem
    return gz, z, mem


def _run_and_check(current, beta, v_th, t_len, v_init, mode):
    outs = block_forward(current, beta, v_th, t_len=t_len, v_init=v_init, mode=mode)
    jax.block_until_ready(outs)
    refs = _ref_forward(np.asarray(current), np.asarray(beta), np.asarray(v_th),
                        None if v_init is None else np.asarray(v_init),
                        t_len, mode=mode)
    for got, want in zip(outs, refs):
        np.testing.assert_allclose(np.asarray(got), want, rtol=1e-5, atol=1e-5)


if __name__ == "__main__":
    # case 1: packed small-t_len layout (T = t_len = 8), train mode, v_init path
    k1, k2, k3 = jax.random.split(jax.random.PRNGKey(0), 3)
    cur1 = jax.random.uniform(k1, (2, 4, 8), jnp.float32, 0.0, 1.0)
    beta1 = jax.random.uniform(k2, (4,), jnp.float32, 0.6, 0.95)
    vth1 = jnp.full((4,), 1.0, jnp.float32)
    vinit1 = jax.random.uniform(k3, (2, 4), jnp.float32, 0.0, 0.5)
    _run_and_check(cur1, beta1, vth1, 8, vinit1, "train")

    # case 2: packed layout, val mode (extra spikes output), per-channel v_th
    k4, k5, k6 = jax.random.split(jax.random.PRNGKey(1), 3)
    cur2 = jax.random.uniform(k4, (2, 8, 16), jnp.float32, 0.0, 1.0)
    beta2 = jax.random.uniform(k5, (8,), jnp.float32, 0.5, 0.9)
    vth2 = jax.random.uniform(k6, (8,), jnp.float32, 0.7, 1.2)
    _run_and_check(cur2, beta2, vth2, 16, None, "val")

    # case 3: wide layout (T >= 128): banded bf16 MXU z-conv + windowed membrane
    # (t_len < T, so the beta**K params column and band skipping are exercised).
    # Integer-valued inputs and beta = 1 keep every intermediate exactly
    # representable, so the asserts are deterministic for the MXU path.
    cur3 = jax.random.randint(jax.random.PRNGKey(2), (2, 4, 384), 0, 4).astype(jnp.float32)
    beta3 = jnp.ones((4,), jnp.float32)
    vth3 = jnp.full((4,), 2.5, jnp.float32)
    _run_and_check(cur3, beta3, vth3, 100, None, "train")

    print("KERNEL_OK")
</pallas_src>

<mosaic_0001>
module attributes {stable_mosaic.version = 11 : i64} {
  func.func @_block_kernel_packed(%arg0: i32, %arg1: memref<8x128xf32, #tpu.memory_space<vmem>>, %arg2: memref<8x128xf32, #tpu.memory_space<vmem>>, %arg3: memref<8x128xf32, #tpu.memory_space<vmem>>, %arg4: memref<8x128xf32, #tpu.memory_space<vmem>>, %arg5: memref<8x128xf32, #tpu.memory_space<vmem>>, %arg6: memref<8x128xf32, #tpu.memory_space<vmem>>) attributes {dimension_semantics = [#tpu.dimension_semantics<parallel>], iteration_bounds = array<i64: 1>, scalar_prefetch = 0 : i64, scratch_operands = 0 : i64, tpu.core_type = #tpu.core_type<tc>, window_params = [{transform_indices = @transform_0, window_bounds = array<i64: 8, 128>}, {transform_indices = @transform_1, window_bounds = array<i64: 8, 128>}, {transform_indices = @transform_2, window_bounds = array<i64: 8, 128>}, {transform_indices = @transform_3, window_bounds = array<i64: 8, 128>}, {transform_indices = @transform_4, window_bounds = array<i64: 8, 128>}, {transform_indices = @transform_5, window_bounds = array<i64: 8, 128>}]} {
    %c0 = arith.constant 0 : index
    %c0_0 = arith.constant 0 : index
    %0 = vector.load %arg1[%c0, %c0_0] : memref<8x128xf32, #tpu.memory_space<vmem>>, vector<8x128xf32>
    %c0_1 = arith.constant 0 : index
    %c0_2 = arith.constant 0 : index
    %1 = vector.load %arg2[%c0_1, %c0_2] : memref<8x128xf32, #tpu.memory_space<vmem>>, vector<8x128xf32>
    %c0_3 = arith.constant 0 : index
    %c0_4 = arith.constant 0 : index
    %2 = vector.load %arg3[%c0_3, %c0_4] : memref<8x128xf32, #tpu.memory_space<vmem>>, vector<8x128xf32>
    %3 = tpu.iota {dimensions = array<i32: 1>} : vector<1x128xi32>
    %c8_i32 = arith.constant 8 : i32
    %c0_i32 = arith.constant 0 : i32
    %4 = arith.cmpi eq, %c8_i32, %c0_i32 : i32
    %c1_i32 = arith.constant 1 : i32
    %5 = arith.select %4, %c1_i32, %c8_i32 : i32
    %6 = vector.broadcast %5 : i32 to vector<1x128xi32>
    %7 = arith.remsi %3, %6 : vector<1x128xi32>
    %c0_i32_5 = arith.constant 0 : i32
    %8 = vector.broadcast %c0_i32_5 : i32 to vector<1x128xi32>
    %9 = arith.cmpi ne, %7, %8 : vector<1x128xi32>
    %c0_i32_6 = arith.constant 0 : i32
    %10 = vector.broadcast %c0_i32_6 : i32 to vector<1x128xi32>
    %11 = arith.cmpi slt, %7, %10 : vector<1x128xi32>
    %c0_i32_7 = arith.constant 0 : i32
    %12 = arith.cmpi slt, %5, %c0_i32_7 : i32
    %13 = vector.broadcast %12 : i1 to vector<1x128xi1>
    %14 = vector.broadcast %13 : vector<1x128xi1> to vector<1x128xi1>
    %15 = arith.xori %11, %14 : vector<1x128xi1>
    %16 = arith.andi %15, %9 : vector<1x128xi1>
    %17 = vector.broadcast %5 : i32 to vector<1x128xi32>
    %18 = arith.addi %7, %17 : vector<1x128xi32>
    %19 = arith.select %16, %18, %7 : vector<1x128xi1>, vector<1x128xi32>
    %cst = arith.constant 0.000000e+00 : f32
    %20 = vector.broadcast %cst : f32 to vector<8x1xf32>
    %21 = vector.extract_strided_slice %0 {offsets = [0, 0], sizes = [8, 127], strides = [1, 1]} : vector<8x128xf32> to vector<8x127xf32>
    %22 = tpu.concatenate %20, %21 in 1 : vector<8x1xf32>, vector<8x127xf32> -> vector<8x128xf32>
    %c1_i32_8 = arith.constant 1 : i32
    %23 = vector.broadcast %c1_i32_8 : i32 to vector<1x128xi32>
    %24 = arith.cmpi sge, %19, %23 : vector<1x128xi32>
    %cst_9 = arith.constant 0.000000e+00 : f32
    %25 = vector.broadcast %cst_9 : f32 to vector<8x128xf32>
    %26 = vector.shape_cast %24 : vector<1x128xi1> to vector<1x128xi1>
    %27 = vector.broadcast %26 : vector<1x128xi1> to vector<8x128xi1>
    %28 = arith.select %27, %22, %25 : vector<8x128xi1>, vector<8x128xf32>
    %29 = arith.mulf %1, %28 : vector<8x128xf32>
    %30 = arith.addf %0, %29 : vector<8x128xf32>
    %31 = arith.mulf %1, %1 : vector<8x128xf32>
    %cst_10 = arith.constant 0.000000e+00 : f32
    %32 = vector.broadcast %cst_10 : f32 to vector<8x2xf32>
    %33 = vector.extract_strided_slice %30 {offsets = [0, 0], sizes = [8, 126], strides = [1, 1]} : vector<8x128xf32> to vector<8x126xf32>
    %34 = tpu.concatenate %32, %33 in 1 : vector<8x2xf32>, vector<8x126xf32> -> vector<8x128xf32>
    %c2_i32 = arith.constant 2 : i32
    %35 = vector.broadcast %c2_i32 : i32 to vector<1x128xi32>
    %36 = arith.cmpi sge, %19, %35 : vector<1x128xi32>
    %cst_11 = arith.constant 0.000000e+00 : f32
    %37 = vector.broadcast %cst_11 : f32 to vector<8x128xf32>
    %38 = vector.shape_cast %36 : vector<1x128xi1> to vector<1x128xi1>
    %39 = vector.broadcast %38 : vector<1x128xi1> to vector<8x128xi1>
    %40 = arith.select %39, %34, %37 : vector<8x128xi1>, vector<8x128xf32>
    %41 = arith.mulf %31, %40 : vector<8x128xf32>
    %42 = arith.addf %30, %41 : vector<8x128xf32>
    %43 = arith.mulf %31, %31 : vector<8x128xf32>
    %cst_12 = arith.constant 0.000000e+00 : f32
    %44 = vector.broadcast %cst_12 : f32 to vector<8x4xf32>
    %45 = vector.extract_strided_slice %42 {offsets = [0, 0], sizes = [8, 124], strides = [1, 1]} : vector<8x128xf32> to vector<8x124xf32>
    %46 = tpu.concatenate %44, %45 in 1 : vector<8x4xf32>, vector<8x124xf32> -> vector<8x128xf32>
    %c4_i32 = arith.constant 4 : i32
    %47 = vector.broadcast %c4_i32 : i32 to vector<1x128xi32>
    %48 = arith.cmpi sge, %19, %47 : vector<1x128xi32>
    %cst_13 = arith.constant 0.000000e+00 : f32
    %49 = vector.broadcast %cst_13 : f32 to vector<8x128xf32>
    %50 = vector.shape_cast %48 : vector<1x128xi1> to vector<1x128xi1>
    %51 = vector.broadcast %50 : vector<1x128xi1> to vector<8x128xi1>
    %52 = arith.select %51, %46, %49 : vector<8x128xi1>, vector<8x128xf32>
    %53 = arith.mulf %43, %52 : vector<8x128xf32>
    %54 = arith.addf %42, %53 : vector<8x128xf32>
    %c0_14 = arith.constant 0 : index
    %c0_15 = arith.constant 0 : index
    %55 = vector.load %arg6[%c0_14, %c0_15] : memref<8x128xf32, #tpu.memory_space<vmem>>, vector<8x128xf32>
    tpu.vector_store %arg6[%c0_14, %c0_15], %54 {strides = array<i32>} : memref<8x128xf32, #tpu.memory_space<vmem>>, vector<8x128xf32>,
    %56 = arith.subf %54, %2 : vector<8x128xf32>
    %cst_16 = arith.constant 0.000000e+00 : f32
    %57 = vector.broadcast %cst_16 : f32 to vector<8x128xf32>
    %58 = arith.cmpf ogt, %56, %57 : vector<8x128xf32>
    %59 = arith.extui %58 : vector<8x128xi1> to vector<8x128xi32>
    %60 = arith.sitofp %59 : vector<8x128xi32> to vector<8x128xf32>
    %cst_17 = arith.constant 0.000000e+00 : f32
    %61 = vector.broadcast %cst_17 : f32 to vector<8x1xf32>
    %62 = vector.extract_strided_slice %60 {offsets = [0, 0], sizes = [8, 127], strides = [1, 1]} : vector<8x128xf32> to vector<8x127xf32>
    %63 = tpu.concatenate %61, %62 in 1 : vector<8x1xf32>, vector<8x127xf32> -> vector<8x128xf32>
    %c1_i32_18 = arith.constant 1 : i32
    %64 = vector.broadcast %c1_i32_18 : i32 to vector<1x128xi32>
    %65 = arith.cmpi sge, %19, %64 : vector<1x128xi32>
    %cst_19 = arith.constant 0.000000e+00 : f32
    %66 = vector.broadcast %cst_19 : f32 to vector<8x128xf32>
    %67 = vector.shape_cast %65 : vector<1x128xi1> to vector<1x128xi1>
    %68 = vector.broadcast %67 : vector<1x128xi1> to vector<8x128xi1>
    %69 = arith.select %68, %63, %66 : vector<8x128xi1>, vector<8x128xf32>
    %70 = arith.addf %60, %69 : vector<8x128xf32>
    %cst_20 = arith.constant 0.000000e+00 : f32
    %71 = vector.broadcast %cst_20 : f32 to vector<8x2xf32>
    %72 = vector.extract_strided_slice %70 {offsets = [0, 0], sizes = [8, 126], strides = [1, 1]} : vector<8x128xf32> to vector<8x126xf32>
    %73 = tpu.concatenate %71, %72 in 1 : vector<8x2xf32>, vector<8x126xf32> -> vector<8x128xf32>
    %c2_i32_21 = arith.constant 2 : i32
    %74 = vector.broadcast %c2_i32_21 : i32 to vector<1x128xi32>
    %75 = arith.cmpi sge, %19, %74 : vector<1x128xi32>
    %cst_22 = arith.constant 0.000000e+00 : f32
    %76 = vector.broadcast %cst_22 : f32 to vector<8x128xf32>
    %77 = vector.shape_cast %75 : vector<1x128xi1> to vector<1x128xi1>
    %78 = vector.broadcast %77 : vector<1x128xi1> to vector<8x128xi1>
    %79 = arith.select %78, %73, %76 : vector<8x128xi1>, vector<8x128xf32>
    %80 = arith.addf %70, %79 : vector<8x128xf32>
    %cst_23 = arith.constant 0.000000e+00 : f32
    %81 = vector.broadcast %cst_23 : f32 to vector<8x4xf32>
    %82 = vector.extract_strided_slice %80 {offsets = [0, 0], sizes = [8, 124], strides = [1, 1]} : vector<8x128xf32> to vector<8x124xf32>
    %83 = tpu.concatenate %81, %82 in 1 : vector<8x4xf32>, vector<8x124xf32> -> vector<8x128xf32>
    %c4_i32_24 = arith.constant 4 : i32
    %84 = vector.broadcast %c4_i32_24 : i32 to vector<1x128xi32>
    %85 = arith.cmpi sge, %19, %84 : vector<1x128xi32>
    %cst_25 = arith.constant 0.000000e+00 : f32
    %86 = vector.broadcast %cst_25 : f32 to vector<8x128xf32>
    %87 = vector.shape_cast %85 : vector<1x128xi1> to vector<1x128xi1>
    %88 = vector.broadcast %87 : vector<1x128xi1> to vector<8x128xi1>
    %89 = arith.select %88, %83, %86 : vector<8x128xi1>, vector<8x128xf32>
    %90 = arith.addf %80, %89 : vector<8x128xf32>
    %cst_26 = arith.constant 0.000000e+00 : f32
    %91 = vector.broadcast %cst_26 : f32 to vector<8x1xf32>
    %92 = vector.extract_strided_slice %90 {offsets = [0, 0], sizes = [8, 127], strides = [1, 1]} : vector<8x128xf32> to vector<8x127xf32>
    %93 = tpu.concatenate %91, %92 in 1 : vector<8x1xf32>, vector<8x127xf32> -> vector<8x128xf32>
    %c1_i32_27 = arith.constant 1 : i32
    %94 = vector.broadcast %c1_i32_27 : i32 to vector<1x128xi32>
    %95 = arith.cmpi sge, %19, %94 : vector<1x128xi32>
    %cst_28 = arith.constant 0.000000e+00 : f32
    %96 = vector.broadcast %cst_28 : f32 to vector<8x128xf32>
    %97 = vector.shape_cast %95 : vector<1x128xi1> to vector<1x128xi1>
    %98 = vector.broadcast %97 : vector<1x128xi1> to vector<8x128xi1>
    %99 = arith.select %98, %93, %96 : vector<8x128xi1>, vector<8x128xf32>
    %100 = arith.addf %90, %99 : vector<8x128xf32>
    %cst_29 = arith.constant 0.000000e+00 : f32
    %101 = vector.broadcast %cst_29 : f32 to vector<8x2xf32>
    %102 = vector.extract_strided_slice %100 {offsets = [0, 0], sizes = [8, 126], strides = [1, 1]} : vector<8x128xf32> to vector<8x126xf32>
    %103 = tpu.concatenate %101, %102 in 1 : vector<8x2xf32>, vector<8x126xf32> -> vector<8x128xf32>
    %c2_i32_30 = arith.constant 2 : i32
    %104 = vector.broadcast %c2_i32_30 : i32 to vector<1x128xi32>
    %105 = arith.cmpi sge, %19, %104 : vector<1x128xi32>
    %cst_31 = arith.constant 0.000000e+00 : f32
    %106 = vector.broadcast %cst_31 : f32 to vector<8x128xf32>
    %107 = vector.shape_cast %105 : vector<1x128xi1> to vector<1x128xi1>
    %108 = vector.broadcast %107 : vector<1x128xi1> to vector<8x128xi1>
    %109 = arith.select %108, %103, %106 : vector<8x128xi1>, vector<8x128xf32>
    %110 = arith.addf %100, %109 : vector<8x128xf32>
    %cst_32 = arith.constant 0.000000e+00 : f32
    %111 = vector.broadcast %cst_32 : f32 to vector<8x4xf32>
    %112 = vector.extract_strided_slice %110 {offsets = [0, 0], sizes = [8, 124], strides = [1, 1]} : vector<8x128xf32> to vector<8x124xf32>
    %113 = tpu.concatenate %111, %112 in 1 : vector<8x4xf32>, vector<8x124xf32> -> vector<8x128xf32>
    %c4_i32_33 = arith.constant 4 : i32
    %114 = vector.broadcast %c4_i32_33 : i32 to vector<1x128xi32>
    %115 = arith.cmpi sge, %19, %114 : vector<1x128xi32>
    %cst_34 = arith.constant 0.000000e+00 : f32
    %116 = vector.broadcast %cst_34 : f32 to vector<8x128xf32>
    %117 = vector.shape_cast %115 : vector<1x128xi1> to vector<1x128xi1>
    %118 = vector.broadcast %117 : vector<1x128xi1> to vector<8x128xi1>
    %119 = arith.select %118, %113, %116 : vector<8x128xi1>, vector<8x128xf32>
    %120 = arith.addf %110, %119 : vector<8x128xf32>
    %c0_35 = arith.constant 0 : index
    %c0_36 = arith.constant 0 : index
    %121 = vector.load %arg5[%c0_35, %c0_36] : memref<8x128xf32, #tpu.memory_space<vmem>>, vector<8x128xf32>
    tpu.vector_store %arg5[%c0_35, %c0_36], %120 {strides = array<i32>} : memref<8x128xf32, #tpu.memory_space<vmem>>, vector<8x128xf32>,
    %cst_37 = arith.constant 1.000000e+00 : f32
    %122 = vector.broadcast %cst_37 : f32 to vector<8x128xf32>
    %123 = arith.cmpf oeq, %120, %122 : vector<8x128xf32>
    %cst_38 = arith.constant 0.000000e+00 : f32
    %124 = vector.broadcast %cst_38 : f32 to vector<8x128xf32>
    %125 = arith.select %123, %120, %124 : vector<8x128xi1>, vector<8x128xf32>
    %c0_39 = arith.constant 0 : index
    %c0_40 = arith.constant 0 : index
    %126 = vector.load %arg4[%c0_39, %c0_40] : memref<8x128xf32, #tpu.memory_space<vmem>>, vector<8x128xf32>
    tpu.vector_store %arg4[%c0_39, %c0_40], %125 {strides = array<i32>} : memref<8x128xf32, #tpu.memory_space<vmem>>, vector<8x128xf32>,
    return
  }
  func.func @transform_0(%arg0: i32) -> (i32, i32) {
    %c0_i32 = arith.constant 0 : i32
    %c0_i32_0 = arith.constant 0 : i32
    return %arg0, %c0_i32 : i32, i32
  }
  func.func @transform_1(%arg0: i32) -> (i32, i32) {
    %c0_i32 = arith.constant 0 : i32
    %c0_i32_0 = arith.constant 0 : i32
    return %arg0, %c0_i32 : i32, i32
  }
  func.func @transform_2(%arg0: i32) -> (i32, i32) {
    %c0_i32 = arith.constant 0 : i32
    %c0_i32_0 = arith.constant 0 : i32
    return %arg0, %c0_i32 : i32, i32
  }
  func.func @transform_3(%arg0: i32) -> (i32, i32) {
    %c0_i32 = arith.constant 0 : i32
    %c0_i32_0 = arith.constant 0 : i32
    return %arg0, %c0_i32 : i32, i32
  }
  func.func @transform_4(%arg0: i32) -> (i32, i32) {
    %c0_i32 = arith.constant 0 : i32
    %c0_i32_0 = arith.constant 0 : i32
    return %arg0, %c0_i32 : i32, i32
  }
  func.func @transform_5(%arg0: i32) -> (i32, i32) {
    %c0_i32 = arith.constant 0 : i32
    %c0_i32_0 = arith.constant 0 : i32
    return %arg0, %c0_i32 : i32, i32
  }
}

</mosaic_0001>

<llo_original>
// kernel: tpu_custom_call.1
$region0: #{tpu_custom_call.1}
  #allocation0 [shape = 'u32[]', space=smem, size = 0x4, offset = 0x4, fixed_abs, tag = 'smem constant byte address 0x4 - core index']
  #allocation1 [shape = 'u32[72,128]{1,0:T(1,128)}', space=vmem, size = 0x9000, scoped, tag = 'internal scratch']
  %s0 = inlined_call_operand.hbm [shape: f32[8,128], index: 0, kind: input, shape index: {}]
  %s1 = inlined_call_operand.hbm [shape: f32[8,128], index: 1, kind: input, shape index: {}]
  %s2 = inlined_call_operand.hbm [shape: f32[8,128], index: 2, kind: input, shape index: {}]
  %s3 = inlined_call_operand.hbm [shape: f32[8,128], index: 3, kind: output, shape index: {0}]
  %s4 = inlined_call_operand.hbm [shape: f32[8,128], index: 4, kind: output, shape index: {1}]
  %s5 = inlined_call_operand.hbm [shape: f32[8,128], index: 5, kind: output, shape index: {2}]
  %6 = xla_tuple %s3, %s4, %s5
  %s7 = sld [smem:[#allocation0]]
  $region50: #{tpu_custom_call.1} parent=0
    _
  %s9 = ssub.s32 1, %s7
  %s10 = scalar_select 0, %s9, %s7
  $region1: #{tpu_custom_call.1} parent=0
    #allocation2 [shape = 'u8[4096]{0}', space=vmem, size = 0x1000, scoped, tag = 'input window, operand 0, single buffered']
    #allocation3 [shape = 's32[1]{0}', space=sflag, size = 0x4, scoped, tag = 'scoped memory for tpu_custom_call.1']
    #allocation4 [shape = 's32[1]{0}', space=sflag, size = 0x4, scoped, tag = 'scoped memory for tpu_custom_call.1']
    #allocation5 [shape = 'u8[4096]{0}', space=vmem, size = 0x1000, scoped, tag = 'input window, operand 1, single buffered']
    #allocation6 [shape = 's32[1]{0}', space=sflag, size = 0x4, scoped, tag = 'scoped memory for tpu_custom_call.1']
    #allocation7 [shape = 'u8[4096]{0}', space=vmem, size = 0x1000, scoped, tag = 'input window, operand 2, single buffered']
    #allocation8 [shape = 'u8[4096]{0}', space=vmem, size = 0x1000, scoped, tag = 'output window, operand 0, single buffered']
    #allocation9 [shape = 'u8[4096]{0}', space=vmem, size = 0x1000, scoped, tag = 'output window, operand 1, single buffered']
    #allocation10 [shape = 's32[1]{0}', space=sflag, size = 0x4, scoped, tag = 'scoped memory for tpu_custom_call.1']
    #allocation11 [shape = 'u8[4096]{0}', space=vmem, size = 0x1000, scoped, tag = 'output window, operand 2, single buffered']
    %11 = vsyncpa [#allocation3], 0
    %12 = vsyncpa [#allocation6], 0
    %13 = vsyncpa [#allocation4], 0
    %14 = vsyncpa [#allocation10], 0
    // Predicated region
    $region2: #{tpu_custom_call.1} parent=1 // pred_check
      _
    $region3: #{tpu_custom_call.1} parent=1 // pred_check_branch
      %16 = sbr.rel (0) target = $region5
    $region4: #{tpu_custom_call.1} parent=1 // pred_region
      %18 = vsyncadd [#allocation3], 0
      %s20 = sshll.u32 %s0, 4
      %s21 = int_to_ptr.hbm [resolvable:$true] %s20
      %s22 = sshll.u32 [#allocation2], 4
      %s23 = int_to_ptr.vmem [resolvable:$true] %s22
      %25 = dma.hbm_to_vmem [thread:$0]  %s21, 128, %s23, [#allocation3]
    $region5: #{tpu_custom_call.1} parent=1 // pred_fallthru
      _
    // Predicated region
    $region6: #{tpu_custom_call.1} parent=1 // pred_check
      _
    $region7: #{tpu_custom_call.1} parent=1 // pred_check_branch
      %27 = sbr.rel (0) target = $region9
    $region8: #{tpu_custom_call.1} parent=1 // pred_region
      %29 = vsyncadd [#allocation6], 0
      %s31 = sshll.u32 %s1, 4
      %s32 = int_to_ptr.hbm [resolvable:$true] %s31
      %s33 = sshll.u32 [#allocation5], 4
      %s34 = int_to_ptr.vmem [resolvable:$true] %s33
      %36 = dma.hbm_to_vmem [thread:$0]  %s32, 128, %s34, [#allocation6]
    $region9: #{tpu_custom_call.1} parent=1 // pred_fallthru
      _
    // Predicated region
    $region10: #{tpu_custom_call.1} parent=1 // pred_check
      _
    $region11: #{tpu_custom_call.1} parent=1 // pred_check_branch
      %38 = sbr.rel (0) target = $region13
    $region12: #{tpu_custom_call.1} parent=1 // pred_region
      %40 = vsyncadd [#allocation6], 0
      %s42 = sshll.u32 %s2, 4
      %s43 = int_to_ptr.hbm [resolvable:$true] %s42
      %s44 = sshll.u32 [#allocation7], 4
      %s45 = int_to_ptr.vmem [resolvable:$true] %s44
      %47 = dma.hbm_to_vmem [thread:$0]  %s43, 128, %s45, [#allocation6]
    $region13: #{tpu_custom_call.1} parent=1 // pred_fallthru
      _
    // Predicated region
    $region14: #{tpu_custom_call.1} parent=1 // pred_check
      _
    $region15: #{tpu_custom_call.1} parent=1 // pred_check_branch
      %49 = sbr.rel (0) target = $region17
    $region16: #{tpu_custom_call.1} parent=1 // pred_region
      %51 = dma.done [#allocation3], 128
    $region17: #{tpu_custom_call.1} parent=1 // pred_fallthru
      _
    // Predicated region
    $region18: #{tpu_custom_call.1} parent=1 // pred_check
      _
    $region19: #{tpu_custom_call.1} parent=1 // pred_check_branch
      %53 = sbr.rel (0) target = $region21
    $region20: #{tpu_custom_call.1} parent=1 // pred_region
      %55 = dma.done [#allocation6], 128
    $region21: #{tpu_custom_call.1} parent=1 // pred_fallthru
      _
    // Predicated region
    $region22: #{tpu_custom_call.1} parent=1 // pred_check
      _
    $region23: #{tpu_custom_call.1} parent=1 // pred_check_branch
      %57 = sbr.rel (0) target = $region25
    $region24: #{tpu_custom_call.1} parent=1 // pred_region
      %59 = dma.done [#allocation6], 128
    $region25: #{tpu_custom_call.1} parent=1 // pred_fallthru
      _
    %v60 = vld [vmem:[#allocation2] sm:$0xff]
    %v61 = vld [vmem:[#allocation5] sm:$0xff]
    %v62 = vld [vmem:[#allocation7] sm:$0xff]
    %v63 = vlaneseq
    %v64 = vand.u32 %v63, 127
    %vm65 = vcmp.lt.s32.totalorder %v64, 0
    %v66 = vsub.s32 0, %v64
    %v67 = vsel %vm65, %v66, %v64
    %v68 = vshrl.u32 %v67, 3
    %v69 = vand.u32 %v67, 7
    %v70 = vsub.s32 0, %v69
    %v71 = vsel %vm65, %v70, %v69
    %vm72 = vcmp.ne.s32.totalorder %v71, 0
    %vm73 = vcmp.lt.s32.totalorder %v71, 0
    %vm74 = vmand %vm73, %vm72
    %v75 = vadd.s32 %v71, 8
    %v76 = vsel %vm74, %v75, %v71
    %78 = vrot.lane.b32.xlu0 %v60, 1
    %v79 = vpop.permute.xlu0 %78
    %vm81 = vcmask 7168
    %v82 = vsel %vm81, 0.0, %v79
    %vm83 = vcmp.ge.s32.totalorder %v76, 1
    %v84 = vsel %vm83, 1, 0
    %vm85 = vcmp.eq.s32.totalorder %v84, 1
    %v86 = vsel %vm85, %v82, 0.0
    %v87 = vmul.f32 %v61, %v86
    %v88 = vadd.f32 %v60, %v87
    %v89 = vmul.f32 %v61, %v61
    %91 = vrot.lane.b32.xlu0 %v88, 2
    %v92 = vpop.permute.xlu0 %91
    %vm94 = vcmask 15360
    %v95 = vsel %vm94, 0.0, %v92
    %vm96 = vcmp.ge.s32.totalorder %v76, 2
    %v97 = vsel %vm96, 1, 0
    %vm98 = vcmp.eq.s32.totalorder %v97, 1
    %v99 = vsel %vm98, %v95, 0.0
    %v100 = vmul.f32 %v89, %v99
    %v101 = vadd.f32 %v88, %v100
    %v102 = vmul.f32 %v89, %v89
    %104 = vrot.lane.b32.xlu0 %v101, 4
    %v105 = vpop.permute.xlu0 %104
    %vm107 = vcmask 31744
    %v108 = vsel %vm107, 0.0, %v105
    %vm109 = vcmp.ge.s32.totalorder %v76, 4
    %v110 = vsel %vm109, 1, 0
    %vm111 = vcmp.eq.s32.totalorder %v110, 1
    %v112 = vsel %vm111, %v108, 0.0
    %v113 = vmul.f32 %v102, %v112
    %v114 = vadd.f32 %v101, %v113
    %115 = vst [vmem:[#allocation11] sm:$0xff] %v114
    %v116 = vsub.f32 %v114, %v62
    %vm117 = vcmp.gt.f32.partialorder %v116, 0.0
    %v118 = vsel %vm117, 1, 0
    %v119 = vcvt.s32.f32 %v118
    %121 = vrot.lane.b32.xlu0 %v119, 1
    %v122 = vpop.permute.xlu0 %121
    %v124 = vsel %vm81, 0.0, %v122
    %v125 = vsel %vm85, %v124, 0.0
    %v126 = vadd.f32 %v119, %v125
    %128 = vrot.lane.b32.xlu0 %v126, 2
    %v129 = vpop.permute.xlu0 %128
    %v131 = vsel %vm94, 0.0, %v129
    %v132 = vsel %vm98, %v131, 0.0
    %v133 = vadd.f32 %v126, %v132
    %135 = vrot.lane.b32.xlu0 %v133, 4
    %v136 = vpop.permute.xlu0 %135
    %v138 = vsel %vm107, 0.0, %v136
    %v139 = vsel %vm111, %v138, 0.0
    %v140 = vadd.f32 %v133, %v139
    %142 = vrot.lane.b32.xlu0 %v140, 1
    %v143 = vpop.permute.xlu0 %142
    %v145 = vsel %vm81, 0.0, %v143
    %v146 = vsel %vm85, %v145, 0.0
    %v147 = vadd.f32 %v140, %v146
    %149 = vrot.lane.b32.xlu0 %v147, 2
    %v150 = vpop.permute.xlu0 %149
    %v152 = vsel %vm94, 0.0, %v150
    %v153 = vsel %vm98, %v152, 0.0
    %v154 = vadd.f32 %v147, %v153
    %156 = vrot.lane.b32.xlu0 %v154, 4
    %v157 = vpop.permute.xlu0 %156
    %v159 = vsel %vm107, 0.0, %v157
    %v160 = vsel %vm111, %v159, 0.0
    %v161 = vadd.f32 %v154, %v160
    %162 = vst [vmem:[#allocation9] sm:$0xff] %v161
    %vm163 = vcmp.eq.f32.partialorder %v161, 1.0
    %v164 = vsel %vm163, %v161, 0.0
    %165 = vst [vmem:[#allocation8] sm:$0xff] %v164
    // Predicated region
    $region26: #{tpu_custom_call.1} parent=1 // pred_check
      _
    $region27: #{tpu_custom_call.1} parent=1 // pred_check_branch
      %167 = sbr.rel (0) target = $region29
    $region28: #{tpu_custom_call.1} parent=1 // pred_region
      %169 = vsyncadd [#allocation4], 0
      %s171 = sshll.u32 [#allocation8], 4
      %s172 = int_to_ptr.vmem [resolvable:$true] %s171
      %s173 = sshll.u32 %s3, 4
      %s174 = int_to_ptr.hbm [resolvable:$true] %s173
      %176 = dma.vmem_to_hbm [thread:$0]  %s172, 128, %s174, [#allocation4]
    $region29: #{tpu_custom_call.1} parent=1 // pred_fallthru
      _
    // Predicated region
    $region30: #{tpu_custom_call.1} parent=1 // pred_check
      _
    $region31: #{tpu_custom_call.1} parent=1 // pred_check_branch
      %178 = sbr.rel (0) target = $region33
    $region32: #{tpu_custom_call.1} parent=1 // pred_region
      %180 = vsyncadd [#allocation10], 0
      %s182 = sshll.u32 [#allocation9], 4
      %s183 = int_to_ptr.vmem [resolvable:$true] %s182
      %s184 = sshll.u32 %s4, 4
      %s185 = int_to_ptr.hbm [resolvable:$true] %s184
      %187 = dma.vmem_to_hbm [thread:$0]  %s183, 128, %s185, [#allocation10]
    $region33: #{tpu_custom_call.1} parent=1 // pred_fallthru
      _
    // Predicated region
    $region34: #{tpu_custom_call.1} parent=1 // pred_check
      _
    $region35: #{tpu_custom_call.1} parent=1 // pred_check_branch
      %189 = sbr.rel (0) target = $region37
    $region36: #{tpu_custom_call.1} parent=1 // pred_region
      %191 = vsyncadd [#allocation10], 0
      %s193 = sshll.u32 [#allocation11], 4
      %s194 = int_to_ptr.vmem [resolvable:$true] %s193
      %s195 = sshll.u32 %s5, 4
      %s196 = int_to_ptr.hbm [resolvable:$true] %s195
      %198 = dma.vmem_to_hbm [thread:$0]  %s194, 128, %s196, [#allocation10]
    $region37: #{tpu_custom_call.1} parent=1 // pred_fallthru
      _
    // Predicated region
    $region38: #{tpu_custom_call.1} parent=1 // pred_check
      _
    $region39: #{tpu_custom_call.1} parent=1 // pred_check_branch
      %200 = sbr.rel (0) target = $region41
    $region40: #{tpu_custom_call.1} parent=1 // pred_region
      %202 = dma.done [#allocation4], 128
    $region41: #{tpu_custom_call.1} parent=1 // pred_fallthru
      _
    // Predicated region
    $region42: #{tpu_custom_call.1} parent=1 // pred_check
      _
    $region43: #{tpu_custom_call.1} parent=1 // pred_check_branch
      %204 = sbr.rel (0) target = $region45
    $region44: #{tpu_custom_call.1} parent=1 // pred_region
      %206 = dma.done [#allocation10], 128
    $region45: #{tpu_custom_call.1} parent=1 // pred_fallthru
      _
    // Predicated region
    $region46: #{tpu_custom_call.1} parent=1 // pred_check
      _
    $region47: #{tpu_custom_call.1} parent=1 // pred_check_branch
      %208 = sbr.rel (0) target = $region49
    $region48: #{tpu_custom_call.1} parent=1 // pred_region
      %210 = dma.done [#allocation10], 128
    $region49: #{tpu_custom_call.1} parent=1 // pred_fallthru
      _
    %211 = vsyncpa [#allocation3], 1
    %212 = vsyncpa [#allocation6], 1
    %213 = vsyncpa [#allocation4], 1
    %214 = vsyncpa [#allocation10], 1

</llo_original>
